<compile_context>
chip_gen: v5e
topology: v5e:2x2
jax: 0.10.0
libtpu: 0.0.40
codegen_flags: <defaults>
</compile_context>

<pallas_src>
import functools

import jax
import jax.numpy as jnp
from jax.experimental import pallas as pl
from jax.experimental.pallas import tpu as pltpu


def _round_up(x, m):
    return ((x + m - 1) // m) * m


def _pad_to(a, shape):
    pads = [(0, t - s) for s, t in zip(a.shape, shape)]
    return jnp.pad(a, pads)


# ----------------------------------------------------------------------------
# Kernel: one batch tile per grid step, all weights resident in VMEM.
# ----------------------------------------------------------------------------
def mlp_kernel(x_ref, w1_ref, b1_ref, w2_ref, b2_ref, w3_ref, b3_ref,
               w4_ref, b4_ref, out_ref, xpad_ref):
    # Stage the raw (TB, F=78) f32 features into a zero-filled (TB, Kp=128)
    # scratch so the padded contraction of fc1 is exact (w1 pad rows are 0 and
    # the pad lanes here are 0).  Cast to bf16 (MXU-native) on the way out.
    f = x_ref.shape[1]
    xpad_ref[...] = jnp.zeros(xpad_ref.shape, xpad_ref.dtype)
    xpad_ref[:, 0:f] = x_ref[...]
    x = xpad_ref[...].astype(w1_ref.dtype)

    h = jnp.dot(x, w1_ref[...], preferred_element_type=jnp.float32) + b1_ref[...]
    h = jnp.maximum(h, 0.0).astype(w2_ref.dtype)

    h = jnp.dot(h, w2_ref[...], preferred_element_type=jnp.float32) + b2_ref[...]
    h = jnp.maximum(h, 0.0).astype(w3_ref.dtype)

    h = jnp.dot(h, w3_ref[...], preferred_element_type=jnp.float32) + b3_ref[...]
    h = jnp.maximum(h, 0.0).astype(w4_ref.dtype)

    h = jnp.dot(h, w4_ref[...], preferred_element_type=jnp.float32) + b4_ref[...]
    # Only the first num_classes columns are real; narrow (masked) writeback
    # keeps HBM output traffic at 60 B/row instead of 512 B/row.
    out_ref[...] = h[:, 0:out_ref.shape[1]].astype(out_ref.dtype)


# ----------------------------------------------------------------------------
# Parameter init (matches PyTorch xavier_uniform_ + zero bias) and one-time prep.
# ----------------------------------------------------------------------------
def xavier_uniform(key, out_dim, in_dim, dtype=jnp.float32):
    bound = jnp.sqrt(6.0 / (in_dim + out_dim))
    return jax.random.uniform(key, (out_dim, in_dim), dtype=dtype,
                              minval=-bound, maxval=bound)


def init_mlpnet_params(key, num_features=78, num_classes=15):
    dims = [(num_features, 256), (256, 128), (128, 128), (128, num_classes)]
    keys = jax.random.split(key, len(dims))
    params = []
    for k, (din, dout) in zip(keys, dims):
        w = xavier_uniform(k, dout, din)           # PyTorch layout (out, in)
        b = jnp.zeros((dout,), jnp.float32)        # constant_(bias, 0)
        params.append((w, b))
    return params


def prepare_params(params, compute_dtype=jnp.bfloat16):
    """One-time: transpose to (in, out), zero-pad to 128-multiples, cast.

    Weights -> bf16 (MXU-native, half the DMA bytes); biases stay f32 so the
    bias add + ReLU happen in the f32 accumulator.  Off the hot path.
    """
    prepped = []
    for w, b in params:
        dout, din = w.shape
        dinp, doutp = _round_up(din, 128), _round_up(dout, 128)
        wp = _pad_to(w.T.astype(compute_dtype), (dinp, doutp))
        bp = _pad_to(b.astype(jnp.float32).reshape(1, -1), (1, doutp))
        prepped.append((jax.device_put(wp), jax.device_put(bp)))
    return tuple(prepped)


# ----------------------------------------------------------------------------
# Batch tiling: single tile when small, otherwise >=2 tiles of 256..2048 rows.
# ----------------------------------------------------------------------------
def _choose_batch_tile(B):
    if B <= 256:
        return B, 1            # single full block (exact dims, no padding)
    tb = min(2048, max(256, _round_up(-(-B // 2), 256)))
    return tb, -(-B // tb)     # Pallas masks the ragged last block


# ----------------------------------------------------------------------------
# Jitted forward: nothing but the pallas_call in the hot path.
# ----------------------------------------------------------------------------
@functools.partial(jax.jit, static_argnames=("num_classes",))
def mlpnet_forward(x, prepped_params, *, num_classes=15):
    """x: (B, num_features) float32. Returns (B, num_classes) f32 logits."""
    x = x.astype(jnp.float32)                      # no-op if already f32
    B, F = x.shape
    (w1, b1), (w2, b2), (w3, b3), (w4, b4) = prepped_params
    Kp, H1p = w1.shape
    H2p, H3p = w2.shape[1], w3.shape[1]

    TB, nb = _choose_batch_tile(B)

    flops = 2 * B * (F * H1p + H1p * H2p + H2p * H3p + H3p * num_classes)
    bytes_accessed = int(
        x.size * x.dtype.itemsize
        + sum(w.size * w.dtype.itemsize + b.size * b.dtype.itemsize
              for w, b in prepped_params)
        + B * num_classes * 4)

    # Grid-invariant weight/bias blocks (fetched once, not per batch tile).
    full2d = lambda a: pl.BlockSpec(a.shape, lambda i: (0, 0))

    return pl.pallas_call(
        mlp_kernel,
        out_shape=jax.ShapeDtypeStruct((B, num_classes), jnp.float32),
        grid=(nb,),
        in_specs=[pl.BlockSpec((TB, F), lambda i: (i, 0)),
                  full2d(w1), full2d(b1),
                  full2d(w2), full2d(b2),
                  full2d(w3), full2d(b3),
                  full2d(w4), full2d(b4)],
        out_specs=pl.BlockSpec((TB, num_classes), lambda i: (i, 0)),
        scratch_shapes=[pltpu.VMEM((TB, Kp), jnp.float32)],
        compiler_params=pltpu.CompilerParams(
            dimension_semantics=("parallel",)),
        cost_estimate=pl.CostEstimate(
            flops=flops, transcendentals=0, bytes_accessed=bytes_accessed),
    )(x, w1, b1, w2, b2, w3, b3, w4, b4)


# ----------------------------------------------------------------------------
# References.
# ----------------------------------------------------------------------------
def mlpnet_reference_f32(x, params):
    h = x
    for i, (w, b) in enumerate(params):
        h = h @ w.T + b
        if i < len(params) - 1:
            h = jnp.maximum(h, 0.0)
    return h


def mlpnet_reference_bf16(x, params):
    # Same mixed precision as the kernel: bf16 operands, f32 accumulate,
    # bias/ReLU in f32.
    h = x.astype(jnp.bfloat16)
    for i, (w, b) in enumerate(params):
        h = jnp.dot(h, w.T.astype(jnp.bfloat16),
                    preferred_element_type=jnp.float32) + b
        if i < len(params) - 1:
            h = jnp.maximum(h, 0.0).astype(jnp.bfloat16)
    return h


if __name__ == "__main__":
    key = jax.random.PRNGKey(0)
    k_param, k_x1, k_x2 = jax.random.split(key, 3)

    num_features, num_classes = 78, 15
    params = init_mlpnet_params(k_param, num_features, num_classes)
    prepped = prepare_params(params)          # one-time weight prep (off hot path)

    # Small batch: single full-array block (TB = B = 2).
    x_small = jax.random.normal(k_x1, (2, num_features), dtype=jnp.float32)
    out_small = jax.block_until_ready(
        mlpnet_forward(x_small, prepped, num_classes=num_classes))
    assert out_small.shape == (2, num_classes), out_small.shape

    ref_bf16 = mlpnet_reference_bf16(x_small, params)
    assert jnp.allclose(out_small, ref_bf16, atol=2e-3, rtol=2e-3), \
        "mismatch vs bf16-matched reference (small batch)"
    ref_f32 = mlpnet_reference_f32(x_small, params)
    assert jnp.allclose(out_small, ref_f32, atol=5e-2, rtol=5e-2), \
        "mismatch vs f32 reference (small batch)"

    # Larger ragged batch: exercises TB=512, grid=2 ("parallel"), masked edge.
    x_big = jax.random.normal(k_x2, (600, num_features), dtype=jnp.float32)
    out_big = jax.block_until_ready(
        mlpnet_forward(x_big, prepped, num_classes=num_classes))
    assert out_big.shape == (600, num_classes), out_big.shape
    ref_big = mlpnet_reference_bf16(x_big, params)
    assert jnp.allclose(out_big, ref_big, atol=2e-3, rtol=2e-3), \
        "mismatch vs bf16-matched reference (big batch)"

    print("KERNEL_OK")
</pallas_src>

<mosaic_0001>
module attributes {stable_mosaic.version = 11 : i64} {
  func.func @mlp_kernel(%arg0: i32, %arg1: memref<2x78xf32, #tpu.memory_space<vmem>>, %arg2: memref<128x256xbf16, #tpu.memory_space<vmem>>, %arg3: memref<1x256xf32, #tpu.memory_space<vmem>>, %arg4: memref<256x128xbf16, #tpu.memory_space<vmem>>, %arg5: memref<1x128xf32, #tpu.memory_space<vmem>>, %arg6: memref<128x128xbf16, #tpu.memory_space<vmem>>, %arg7: memref<1x128xf32, #tpu.memory_space<vmem>>, %arg8: memref<128x128xbf16, #tpu.memory_space<vmem>>, %arg9: memref<1x128xf32, #tpu.memory_space<vmem>>, %arg10: memref<2x15xf32, #tpu.memory_space<vmem>>, %arg11: memref<2x128xf32, #tpu.memory_space<vmem>>) attributes {dimension_semantics = [#tpu.dimension_semantics<parallel>], iteration_bounds = array<i64: 1>, scalar_prefetch = 0 : i64, scratch_operands = 1 : i64, tpu.core_type = #tpu.core_type<tc>, window_params = [{transform_indices = @transform_0, window_bounds = array<i64: 2, 78>}, {pipeline_mode = #tpu.pipeline_mode<synchronous>, transform_indices = @transform_1, window_bounds = array<i64: 128, 256>}, {pipeline_mode = #tpu.pipeline_mode<synchronous>, transform_indices = @transform_2, window_bounds = array<i64: 1, 256>}, {pipeline_mode = #tpu.pipeline_mode<synchronous>, transform_indices = @transform_3, window_bounds = array<i64: 256, 128>}, {pipeline_mode = #tpu.pipeline_mode<synchronous>, transform_indices = @transform_4, window_bounds = array<i64: 1, 128>}, {pipeline_mode = #tpu.pipeline_mode<synchronous>, transform_indices = @transform_5, window_bounds = array<i64: 128, 128>}, {pipeline_mode = #tpu.pipeline_mode<synchronous>, transform_indices = @transform_6, window_bounds = array<i64: 1, 128>}, {pipeline_mode = #tpu.pipeline_mode<synchronous>, transform_indices = @transform_7, window_bounds = array<i64: 128, 128>}, {pipeline_mode = #tpu.pipeline_mode<synchronous>, transform_indices = @transform_8, window_bounds = array<i64: 1, 128>}, {transform_indices = @transform_9, window_bounds = array<i64: 2, 15>}]} {
    %cst = arith.constant 0.000000e+00 : f32
    %0 = vector.broadcast %cst : f32 to vector<2x128xf32>
    %c0 = arith.constant 0 : index
    %c0_0 = arith.constant 0 : index
    %1 = vector.load %arg11[%c0, %c0_0] : memref<2x128xf32, #tpu.memory_space<vmem>>, vector<2x128xf32>
    tpu.vector_store %arg11[%c0, %c0_0], %0 {strides = array<i32>} : memref<2x128xf32, #tpu.memory_space<vmem>>, vector<2x128xf32>,
    %c0_1 = arith.constant 0 : index
    %c0_2 = arith.constant 0 : index
    %2 = vector.load %arg1[%c0_1, %c0_2] : memref<2x78xf32, #tpu.memory_space<vmem>>, vector<2x78xf32>
    %c0_3 = arith.constant 0 : index
    %c0_4 = arith.constant 0 : index
    %3 = vector.load %arg11[%c0_3, %c0_4] : memref<2x128xf32, #tpu.memory_space<vmem>>, vector<2x78xf32>
    tpu.vector_store %arg11[%c0_3, %c0_4], %2 {strides = array<i32>} : memref<2x128xf32, #tpu.memory_space<vmem>>, vector<2x78xf32>,
    %c0_5 = arith.constant 0 : index
    %c0_6 = arith.constant 0 : index
    %4 = vector.load %arg11[%c0_5, %c0_6] : memref<2x128xf32, #tpu.memory_space<vmem>>, vector<2x128xf32>
    %5 = arith.truncf %4 : vector<2x128xf32> to vector<2x128xbf16>
    %c0_7 = arith.constant 0 : index
    %c0_8 = arith.constant 0 : index
    %6 = vector.load %arg2[%c0_7, %c0_8] : memref<128x256xbf16, #tpu.memory_space<vmem>>, vector<128x256xbf16>
    %cst_9 = arith.constant dense<0.000000e+00> : vector<2x256xf32>
    %7 = tpu.matmul %5, %6, %cst_9 {dimension_numbers = #tpu.dot_dimension_numbers<[1], [0], [0], [1], [0, 0, 1, 1], [], []>} : vector<2x128xbf16>, vector<128x256xbf16>, vector<2x256xf32> -> vector<2x256xf32>
    %c0_10 = arith.constant 0 : index
    %c0_11 = arith.constant 0 : index
    %8 = vector.load %arg3[%c0_10, %c0_11] : memref<1x256xf32, #tpu.memory_space<vmem>>, vector<1x256xf32>
    %9 = vector.broadcast %8 : vector<1x256xf32> to vector<2x256xf32>
    %10 = arith.addf %7, %9 : vector<2x256xf32>
    %cst_12 = arith.constant 0.000000e+00 : f32
    %11 = vector.broadcast %cst_12 : f32 to vector<2x256xf32>
    %12 = arith.maximumf %10, %11 : vector<2x256xf32>
    %13 = arith.truncf %12 : vector<2x256xf32> to vector<2x256xbf16>
    %c0_13 = arith.constant 0 : index
    %c0_14 = arith.constant 0 : index
    %14 = vector.load %arg4[%c0_13, %c0_14] : memref<256x128xbf16, #tpu.memory_space<vmem>>, vector<256x128xbf16>
    %cst_15 = arith.constant dense<0.000000e+00> : vector<2x128xf32>
    %15 = tpu.matmul %13, %14, %cst_15 {dimension_numbers = #tpu.dot_dimension_numbers<[1], [0], [0], [1], [0, 0, 1, 1], [], []>} : vector<2x256xbf16>, vector<256x128xbf16>, vector<2x128xf32> -> vector<2x128xf32>
    %c0_16 = arith.constant 0 : index
    %c0_17 = arith.constant 0 : index
    %16 = vector.load %arg5[%c0_16, %c0_17] : memref<1x128xf32, #tpu.memory_space<vmem>>, vector<1x128xf32>
    %17 = vector.broadcast %16 : vector<1x128xf32> to vector<2x128xf32>
    %18 = arith.addf %15, %17 : vector<2x128xf32>
    %cst_18 = arith.constant 0.000000e+00 : f32
    %19 = vector.broadcast %cst_18 : f32 to vector<2x128xf32>
    %20 = arith.maximumf %18, %19 : vector<2x128xf32>
    %21 = arith.truncf %20 : vector<2x128xf32> to vector<2x128xbf16>
    %c0_19 = arith.constant 0 : index
    %c0_20 = arith.constant 0 : index
    %22 = vector.load %arg6[%c0_19, %c0_20] : memref<128x128xbf16, #tpu.memory_space<vmem>>, vector<128x128xbf16>
    %cst_21 = arith.constant dense<0.000000e+00> : vector<2x128xf32>
    %23 = tpu.matmul %21, %22, %cst_21 {dimension_numbers = #tpu.dot_dimension_numbers<[1], [0], [0], [1], [0, 0, 1, 1], [], []>} : vector<2x128xbf16>, vector<128x128xbf16>, vector<2x128xf32> -> vector<2x128xf32>
    %c0_22 = arith.constant 0 : index
    %c0_23 = arith.constant 0 : index
    %24 = vector.load %arg7[%c0_22, %c0_23] : memref<1x128xf32, #tpu.memory_space<vmem>>, vector<1x128xf32>
    %25 = vector.broadcast %24 : vector<1x128xf32> to vector<2x128xf32>
    %26 = arith.addf %23, %25 : vector<2x128xf32>
    %cst_24 = arith.constant 0.000000e+00 : f32
    %27 = vector.broadcast %cst_24 : f32 to vector<2x128xf32>
    %28 = arith.maximumf %26, %27 : vector<2x128xf32>
    %29 = arith.truncf %28 : vector<2x128xf32> to vector<2x128xbf16>
    %c0_25 = arith.constant 0 : index
    %c0_26 = arith.constant 0 : index
    %30 = vector.load %arg8[%c0_25, %c0_26] : memref<128x128xbf16, #tpu.memory_space<vmem>>, vector<128x128xbf16>
    %cst_27 = arith.constant dense<0.000000e+00> : vector<2x128xf32>
    %31 = tpu.matmul %29, %30, %cst_27 {dimension_numbers = #tpu.dot_dimension_numbers<[1], [0], [0], [1], [0, 0, 1, 1], [], []>} : vector<2x128xbf16>, vector<128x128xbf16>, vector<2x128xf32> -> vector<2x128xf32>
    %c0_28 = arith.constant 0 : index
    %c0_29 = arith.constant 0 : index
    %32 = vector.load %arg9[%c0_28, %c0_29] : memref<1x128xf32, #tpu.memory_space<vmem>>, vector<1x128xf32>
    %33 = vector.broadcast %32 : vector<1x128xf32> to vector<2x128xf32>
    %34 = arith.addf %31, %33 : vector<2x128xf32>
    %35 = vector.extract_strided_slice %34 {offsets = [0, 0], sizes = [2, 15], strides = [1, 1]} : vector<2x128xf32> to vector<2x15xf32>
    %c0_30 = arith.constant 0 : index
    %c0_31 = arith.constant 0 : index
    %36 = vector.load %arg10[%c0_30, %c0_31] : memref<2x15xf32, #tpu.memory_space<vmem>>, vector<2x15xf32>
    tpu.vector_store %arg10[%c0_30, %c0_31], %35 {strides = array<i32>} : memref<2x15xf32, #tpu.memory_space<vmem>>, vector<2x15xf32>,
    return
  }
  func.func @transform_0(%arg0: i32) -> (i32, i32) {
    %c0_i32 = arith.constant 0 : i32
    %c0_i32_0 = arith.constant 0 : i32
    return %arg0, %c0_i32 : i32, i32
  }
  func.func @transform_1(%arg0: i32) -> (i32, i32) {
    %c0_i32 = arith.constant 0 : i32
    %c0_i32_0 = arith.constant 0 : i32
    %c0_i32_1 = arith.constant 0 : i32
    return %c0_i32, %c0_i32_0 : i32, i32
  }
  func.func @transform_2(%arg0: i32) -> (i32, i32) {
    %c0_i32 = arith.constant 0 : i32
    %c0_i32_0 = arith.constant 0 : i32
    %c0_i32_1 = arith.constant 0 : i32
    return %c0_i32, %c0_i32_0 : i32, i32
  }
  func.func @transform_3(%arg0: i32) -> (i32, i32) {
    %c0_i32 = arith.constant 0 : i32
    %c0_i32_0 = arith.constant 0 : i32
    %c0_i32_1 = arith.constant 0 : i32
    return %c0_i32, %c0_i32_0 : i32, i32
  }
  func.func @transform_4(%arg0: i32) -> (i32, i32) {
    %c0_i32 = arith.constant 0 : i32
    %c0_i32_0 = arith.constant 0 : i32
    %c0_i32_1 = arith.constant 0 : i32
    return %c0_i32, %c0_i32_0 : i32, i32
  }
  func.func @transform_5(%arg0: i32) -> (i32, i32) {
    %c0_i32 = arith.constant 0 : i32
    %c0_i32_0 = arith.constant 0 : i32
    %c0_i32_1 = arith.constant 0 : i32
    return %c0_i32, %c0_i32_0 : i32, i32
  }
  func.func @transform_6(%arg0: i32) -> (i32, i32) {
    %c0_i32 = arith.constant 0 : i32
    %c0_i32_0 = arith.constant 0 : i32
    %c0_i32_1 = arith.constant 0 : i32
    return %c0_i32, %c0_i32_0 : i32, i32
  }
  func.func @transform_7(%arg0: i32) -> (i32, i32) {
    %c0_i32 = arith.constant 0 : i32
    %c0_i32_0 = arith.constant 0 : i32
    %c0_i32_1 = arith.constant 0 : i32
    return %c0_i32, %c0_i32_0 : i32, i32
  }
  func.func @transform_8(%arg0: i32) -> (i32, i32) {
    %c0_i32 = arith.constant 0 : i32
    %c0_i32_0 = arith.constant 0 : i32
    %c0_i32_1 = arith.constant 0 : i32
    return %c0_i32, %c0_i32_0 : i32, i32
  }
  func.func @transform_9(%arg0: i32) -> (i32, i32) {
    %c0_i32 = arith.constant 0 : i32
    %c0_i32_0 = arith.constant 0 : i32
    return %arg0, %c0_i32 : i32, i32
  }
}

</mosaic_0001>

<llo_original>
// kernel: mlpnet_forward.1
$region0: #{mlpnet_forward.1}
  #allocation0 [shape = 'u32[]', space=smem, size = 0x4, offset = 0x4, fixed_abs, tag = 'smem constant byte address 0x4 - core index']
  #allocation1 [shape = 'u32[72,128]{1,0:T(1,128)}', space=vmem, size = 0x9000, scoped, tag = 'internal scratch']
  #allocation2 [shape = 'f32[2,128]{1,0:T(2,128)}', space=vmem, size = 0x400, scoped, tag = 'scratch operand']
  %s0 = inlined_call_operand.hbm [shape: f32[2,78], index: 0, kind: input, shape index: {}]
  %s1 = inlined_call_operand.hbm [shape: bf16[128,256], index: 1, kind: input, shape index: {}]
  %s2 = inlined_call_operand.hbm [shape: f32[1,256], index: 2, kind: input, shape index: {}]
  %s3 = inlined_call_operand.hbm [shape: bf16[256,128], index: 3, kind: input, shape index: {}]
  %s4 = inlined_call_operand.vmem [shape: f32[1,128], index: 4, kind: input, shape index: {}]
  %s5 = inlined_call_operand.hbm [shape: bf16[128,128], index: 5, kind: input, shape index: {}]
  %s6 = inlined_call_operand.vmem [shape: f32[1,128], index: 6, kind: input, shape index: {}]
  %s7 = inlined_call_operand.hbm [shape: bf16[128,128], index: 7, kind: input, shape index: {}]
  %s8 = inlined_call_operand.vmem [shape: f32[1,128], index: 8, kind: input, shape index: {}]
  %s9 = inlined_call_operand.hbm [shape: f32[2,15], index: 9, kind: output, shape index: {}]
  %s10 = sld [smem:[#allocation0]]
  $region70: #{mlpnet_forward.1} parent=0
    _
  %s12 = ssub.s32 1, %s10
  %s13 = scalar_select 0, %s12, %s10
  $region1: #{mlpnet_forward.1} parent=0
    #allocation3 [shape = 'u8[1024]{0}', space=vmem, size = 0x400, scoped, tag = 'input window, operand 0, single buffered']
    #allocation4 [shape = 's32[1]{0}', space=sflag, size = 0x4, scoped, tag = 'scoped memory for mlpnet_forward.1']
    #allocation5 [shape = 's32[1]{0}', space=sflag, size = 0x4, scoped, tag = 'scoped memory for mlpnet_forward.1']
    #allocation6 [shape = 'u8[65536]{0}', space=vmem, size = 0x10000, scoped, tag = 'input window, operand 1, single buffered']
    #allocation7 [shape = 's32[1]{0}', space=sflag, size = 0x4, scoped, tag = 'scoped memory for mlpnet_forward.1']
    #allocation8 [shape = 'u8[1024]{0}', space=vmem, size = 0x400, scoped, tag = 'input window, operand 2, single buffered']
    #allocation9 [shape = 'u8[65536]{0}', space=vmem, size = 0x10000, scoped, tag = 'input window, operand 3, single buffered']
    #allocation10 [shape = 's32[1]{0}', space=sflag, size = 0x4, scoped, tag = 'scoped memory for mlpnet_forward.1']
    #allocation11 [shape = 'u8[32768]{0}', space=vmem, size = 0x8000, scoped, tag = 'input window, operand 5, single buffered']
    #allocation12 [shape = 'u8[32768]{0}', space=vmem, size = 0x8000, scoped, tag = 'input window, operand 7, single buffered']
    #allocation13 [shape = 's32[1]{0}', space=sflag, size = 0x4, scoped, tag = 'scoped memory for mlpnet_forward.1']
    #allocation14 [shape = 'u8[1024]{0}', space=vmem, size = 0x400, scoped, tag = 'output window, operand 0, single buffered']
    %14 = vsyncpa [#allocation4], 0
    %15 = vsyncpa [#allocation7], 0
    %16 = vsyncpa [#allocation10], 0
    %17 = vsyncpa [#allocation13], 0
    %18 = vsyncpa [#allocation5], 0
    // Predicated region
    $region2: #{mlpnet_forward.1} parent=1 // pred_check
      _
    $region3: #{mlpnet_forward.1} parent=1 // pred_check_branch
      %20 = sbr.rel (0) target = $region5
    $region4: #{mlpnet_forward.1} parent=1 // pred_region
      %22 = vsyncadd [#allocation4], 0
      %s24 = sshll.u32 %s0, 4
      %s25 = int_to_ptr.hbm [resolvable:$true] %s24
      %s26 = sshll.u32 [#allocation3], 4
      %s27 = int_to_ptr.vmem [resolvable:$true] %s26
      %29 = dma.hbm_to_vmem [thread:$0]  %s25, 32, %s27, [#allocation4]
    $region5: #{mlpnet_forward.1} parent=1 // pred_fallthru
      _
    // Predicated region
    $region6: #{mlpnet_forward.1} parent=1 // pred_check
      _
    $region7: #{mlpnet_forward.1} parent=1 // pred_check_branch
      %31 = sbr.rel (0) target = $region9
    $region8: #{mlpnet_forward.1} parent=1 // pred_region
      %33 = vsyncadd [#allocation7], 0
      %s34 = sshll.u32 %s1, 4
      %s35 = int_to_ptr.hbm [resolvable:$true] %s34
      %s36 = sshll.u32 [#allocation6], 4
      %s37 = int_to_ptr.vmem [resolvable:$true] %s36
      %42 = dma.hbm_to_vmem [thread:$0]  %s35, 2048, %s37, [#allocation7], 128, 128, 8
    $region9: #{mlpnet_forward.1} parent=1 // pred_fallthru
      _
    // Predicated region
    $region10: #{mlpnet_forward.1} parent=1 // pred_check
      _
    $region11: #{mlpnet_forward.1} parent=1 // pred_check_branch
      %44 = sbr.rel (0) target = $region13
    $region12: #{mlpnet_forward.1} parent=1 // pred_region
      %46 = vsyncadd [#allocation7], 0
      %s48 = sshll.u32 %s2, 4
      %s49 = int_to_ptr.hbm [resolvable:$true] %s48
      %s50 = sshll.u32 [#allocation8], 4
      %s51 = int_to_ptr.vmem [resolvable:$true] %s50
      %53 = dma.hbm_to_vmem [thread:$0]  %s49, 32, %s51, [#allocation7]
    $region13: #{mlpnet_forward.1} parent=1 // pred_fallthru
      _
    // Predicated region
    $region14: #{mlpnet_forward.1} parent=1 // pred_check
      _
    $region15: #{mlpnet_forward.1} parent=1 // pred_check_branch
      %55 = sbr.rel (0) target = $region17
    $region16: #{mlpnet_forward.1} parent=1 // pred_region
      %57 = vsyncadd [#allocation10], 0
      %s58 = sshll.u32 %s3, 4
      %s59 = int_to_ptr.hbm [resolvable:$true] %s58
      %s60 = sshll.u32 [#allocation9], 4
      %s61 = int_to_ptr.vmem [resolvable:$true] %s60
      %66 = dma.hbm_to_vmem [thread:$0]  %s59, 2048, %s61, [#allocation10], 64, 64, 4
    $region17: #{mlpnet_forward.1} parent=1 // pred_fallthru
      _
    // Predicated region
    $region18: #{mlpnet_forward.1} parent=1 // pred_check
      _
    $region19: #{mlpnet_forward.1} parent=1 // pred_check_branch
      %68 = sbr.rel (0) target = $region21
    $region20: #{mlpnet_forward.1} parent=1 // pred_region
      _
    $region21: #{mlpnet_forward.1} parent=1 // pred_fallthru
      _
    // Predicated region
    $region22: #{mlpnet_forward.1} parent=1 // pred_check
      _
    $region23: #{mlpnet_forward.1} parent=1 // pred_check_branch
      %70 = sbr.rel (0) target = $region25
    $region24: #{mlpnet_forward.1} parent=1 // pred_region
      %72 = vsyncadd [#allocation10], 0
      %s73 = sshll.u32 %s5, 4
      %s74 = int_to_ptr.hbm [resolvable:$true] %s73
      %s75 = sshll.u32 [#allocation11], 4
      %s76 = int_to_ptr.vmem [resolvable:$true] %s75
      %81 = dma.hbm_to_vmem [thread:$0]  %s74, 1024, %s76, [#allocation10], 64, 64, 4
    $region25: #{mlpnet_forward.1} parent=1 // pred_fallthru
      _
    // Predicated region
    $region26: #{mlpnet_forward.1} parent=1 // pred_check
      _
    $region27: #{mlpnet_forward.1} parent=1 // pred_check_branch
      %83 = sbr.rel (0) target = $region29
    $region28: #{mlpnet_forward.1} parent=1 // pred_region
      _
    $region29: #{mlpnet_forward.1} parent=1 // pred_fallthru
      _
    // Predicated region
    $region30: #{mlpnet_forward.1} parent=1 // pred_check
      _
    $region31: #{mlpnet_forward.1} parent=1 // pred_check_branch
      %85 = sbr.rel (0) target = $region33
    $region32: #{mlpnet_forward.1} parent=1 // pred_region
      %87 = vsyncadd [#allocation13], 0
      %s88 = sshll.u32 %s7, 4
      %s89 = int_to_ptr.hbm [resolvable:$true] %s88
      %s90 = sshll.u32 [#allocation12], 4
      %s91 = int_to_ptr.vmem [resolvable:$true] %s90
      %96 = dma.hbm_to_vmem [thread:$0]  %s89, 1024, %s91, [#allocation13], 64, 64, 4
    $region33: #{mlpnet_forward.1} parent=1 // pred_fallthru
      _
    // Predicated region
    $region34: #{mlpnet_forward.1} parent=1 // pred_check
      _
    $region35: #{mlpnet_forward.1} parent=1 // pred_check_branch
      %98 = sbr.rel (0) target = $region37
    $region36: #{mlpnet_forward.1} parent=1 // pred_region
      _
    $region37: #{mlpnet_forward.1} parent=1 // pred_fallthru
      _
    // Predicated region
    $region38: #{mlpnet_forward.1} parent=1 // pred_check
      _
    $region39: #{mlpnet_forward.1} parent=1 // pred_check_branch
      %100 = sbr.rel (0) target = $region41
    $region40: #{mlpnet_forward.1} parent=1 // pred_region
      %102 = dma.done [#allocation4], 32
    $region41: #{mlpnet_forward.1} parent=1 // pred_fallthru
      _
    // Predicated region
    $region42: #{mlpnet_forward.1} parent=1 // pred_check
      _
    $region43: #{mlpnet_forward.1} parent=1 // pred_check_branch
      %104 = sbr.rel (0) target = $region45
    $region44: #{mlpnet_forward.1} parent=1 // pred_region
      %106 = dma.done [#allocation7], 2048
    $region45: #{mlpnet_forward.1} parent=1 // pred_fallthru
      _
    // Predicated region
    $region46: #{mlpnet_forward.1} parent=1 // pred_check
      _
    $region47: #{mlpnet_forward.1} parent=1 // pred_check_branch
      %108 = sbr.rel (0) target = $region49
    $region48: #{mlpnet_forward.1} parent=1 // pred_region
      %110 = dma.done [#allocation7], 32
    $region49: #{mlpnet_forward.1} parent=1 // pred_fallthru
      _
    // Predicated region
    $region50: #{mlpnet_forward.1} parent=1 // pred_check
      _
    $region51: #{mlpnet_forward.1} parent=1 // pred_check_branch
      %112 = sbr.rel (0) target = $region53
    $region52: #{mlpnet_forward.1} parent=1 // pred_region
      %114 = dma.done [#allocation10], 2048
    $region53: #{mlpnet_forward.1} parent=1 // pred_fallthru
      _
    // Predicated region
    $region54: #{mlpnet_forward.1} parent=1 // pred_check
      _
    $region55: #{mlpnet_forward.1} parent=1 // pred_check_branch
      %116 = sbr.rel (0) target = $region57
    $region56: #{mlpnet_forward.1} parent=1 // pred_region
      %118 = dma.done [#allocation10], 1024
    $region57: #{mlpnet_forward.1} parent=1 // pred_fallthru
      _
    // Predicated region
    $region58: #{mlpnet_forward.1} parent=1 // pred_check
      _
    $region59: #{mlpnet_forward.1} parent=1 // pred_check_branch
      %120 = sbr.rel (0) target = $region61
    $region60: #{mlpnet_forward.1} parent=1 // pred_region
      %122 = dma.done [#allocation13], 1024
    $region61: #{mlpnet_forward.1} parent=1 // pred_fallthru
      _
    %123 = vst [vmem:[#allocation2] sm:$0x3] 0.0
    %v124 = vld [vmem:[#allocation3] sm:$0x3]
    %vm125 = vcmask 631808
    %126 = vst.msk [vmem:[#allocation2] sm:$0x3] %vm125, %v124
    %v127 = vld [vmem:[#allocation2] sm:$0x3]
    %v128 = vpack.c.bf16 %v127, %v127
    %v129 = vld [vmem:[#allocation6] sm:$0xff]
    %v130 = vld [vmem:[#allocation6 + $0x8] sm:$0xff]
    %v131 = vld [vmem:[#allocation6 + $0x10] sm:$0xff]
    %v132 = vld [vmem:[#allocation6 + $0x18] sm:$0xff]
    %v133 = vld [vmem:[#allocation6 + $0x20] sm:$0xff]
    %v134 = vld [vmem:[#allocation6 + $0x28] sm:$0xff]
    %v135 = vld [vmem:[#allocation6 + $0x30] sm:$0xff]
    %v136 = vld [vmem:[#allocation6 + $0x38] sm:$0xff]
    %v137 = vld [vmem:[#allocation6 + $0x40] sm:$0xff]
    %v138 = vld [vmem:[#allocation6 + $0x48] sm:$0xff]
    %v139 = vld [vmem:[#allocation6 + $0x50] sm:$0xff]
    %v140 = vld [vmem:[#allocation6 + $0x58] sm:$0xff]
    %v141 = vld [vmem:[#allocation6 + $0x60] sm:$0xff]
    %v142 = vld [vmem:[#allocation6 + $0x68] sm:$0xff]
    %v143 = vld [vmem:[#allocation6 + $0x70] sm:$0xff]
    %v144 = vld [vmem:[#allocation6 + $0x78] sm:$0xff]
    %v145 = vld [vmem:[#allocation8] sm:$0x3]
    %v147 = vperm.slane %v145, 0
    %v148 = vperm.slane %v145, 1
    %v167 = vunpack.c.l.b16 %v129
    %v168 = vunpack.c.h.b16 %v129
    %v169 = vunpack.c.l.b16 %v130
    %v170 = vunpack.c.h.b16 %v130
    %v171 = vunpack.c.l.b16 %v131
    %v172 = vunpack.c.h.b16 %v131
    %v173 = vunpack.c.l.b16 %v132
    %v174 = vunpack.c.h.b16 %v132
    %v175 = vunpack.c.l.b16 %v133
    %v176 = vunpack.c.h.b16 %v133
    %v177 = vunpack.c.l.b16 %v134
    %v178 = vunpack.c.h.b16 %v134
    %v179 = vunpack.c.l.b16 %v135
    %v180 = vunpack.c.h.b16 %v135
    %v181 = vunpack.c.l.b16 %v136
    %v182 = vunpack.c.h.b16 %v136
    %v183 = vunpack.c.l.b16 %v137
    %v184 = vunpack.c.h.b16 %v137
    %v185 = vunpack.c.l.b16 %v138
    %v186 = vunpack.c.h.b16 %v138
    %v187 = vunpack.c.l.b16 %v139
    %v188 = vunpack.c.h.b16 %v139
    %v189 = vunpack.c.l.b16 %v140
    %v190 = vunpack.c.h.b16 %v140
    %v191 = vunpack.c.l.b16 %v141
    %v192 = vunpack.c.h.b16 %v141
    %v193 = vunpack.c.l.b16 %v142
    %v194 = vunpack.c.h.b16 %v142
    %v195 = vunpack.c.l.b16 %v143
    %v196 = vunpack.c.h.b16 %v143
    %v197 = vunpack.c.l.b16 %v144
    %v198 = vunpack.c.h.b16 %v144
    %v199 = vpack.c.b16 %v169, %v167
    %v200 = vpack.c.b16 %v170, %v168
    %v201 = vpack.c.b16 %v173, %v171
    %v202 = vpack.c.b16 %v174, %v172
    %v203 = vpack.c.b16 %v177, %v175
    %v204 = vpack.c.b16 %v178, %v176
    %v205 = vpack.c.b16 %v181, %v179
    %v206 = vpack.c.b16 %v182, %v180
    %v207 = vpack.c.b16 %v185, %v183
    %v208 = vpack.c.b16 %v186, %v184
    %v209 = vpack.c.b16 %v189, %v187
    %v210 = vpack.c.b16 %v190, %v188
    %v211 = vpack.c.b16 %v193, %v191
    %v212 = vpack.c.b16 %v194, %v192
    %v213 = vpack.c.b16 %v197, %v195
    %v214 = vpack.c.b16 %v198, %v196
    %231 = vmatpush.bf16.msra.mxu0 %v213
    %232 = vmatpush.bf16.msra.mxu0 %v211
    %233 = vmatpush.bf16.msra.mxu0 %v209
    %234 = vmatpush.bf16.msra.mxu0 %v207
    %235 = vmatpush.bf16.msra.mxu0 %v205
    %236 = vmatpush.bf16.msra.mxu0 %v203
    %237 = vmatpush.bf16.msra.mxu0 %v201
    %238 = vmatpush.bf16.msra.mxu0 %v199
    %239 = vmatmul.bf16.gmra.mxu0 %v128
    %v240 = vpop.f32.mrf.mxu0
    %v241 = vadd.f32 %v147, %v240
    %v242 = vpop.f32.mrf.mxu0
    %243 = vdwg.mxu0
    %244 = vmatpush.bf16.msra.mxu0 %v214
    %245 = vmatpush.bf16.msra.mxu0 %v212
    %246 = vmatpush.bf16.msra.mxu0 %v210
    %247 = vmatpush.bf16.msra.mxu0 %v208
    %248 = vmatpush.bf16.msra.mxu0 %v206
    %249 = vmatpush.bf16.msra.mxu0 %v204
    %250 = vmatpush.bf16.msra.mxu0 %v202
    %251 = vmatpush.bf16.msra.mxu0 %v200
    %252 = vmatmul.bf16.gmra.mxu0 %v128
    %v253 = vpop.f32.mrf.mxu0
    %v254 = vadd.f32 %v148, %v253
    %v255 = vpop.f32.mrf.mxu0
    %256 = vdwg.mxu0
    %v257 = vmax.f32 %v241, 0.0
    %v258 = vmax.f32 %v254, 0.0
    %v259 = vpack.c.bf16 %v257, %v257
    %v260 = vpack.c.bf16 %v258, %v258
    %v261 = vld [vmem:[#allocation9] sm:$0xf]
    %v262 = vld [vmem:[#allocation9 + $0x4] sm:$0xf]
    %v263 = vld [vmem:[#allocation9 + $0x8] sm:$0xf]
    %v264 = vld [vmem:[#allocation9 + $0xc] sm:$0xf]
    %v265 = vld [vmem:[#allocation9 + $0x10] sm:$0xf]
    %v266 = vld [vmem:[#allocation9 + $0x14] sm:$0xf]
    %v267 = vld [vmem:[#allocation9 + $0x18] sm:$0xf]
    %v268 = vld [vmem:[#allocation9 + $0x1c] sm:$0xf]
    %v269 = vld [vmem:[#allocation9 + $0x20] sm:$0xf]
    %v270 = vld [vmem:[#allocation9 + $0x24] sm:$0xf]
    %v271 = vld [vmem:[#allocation9 + $0x28] sm:$0xf]
    %v272 = vld [vmem:[#allocation9 + $0x2c] sm:$0xf]
    %v273 = vld [vmem:[#allocation9 + $0x30] sm:$0xf]
    %v274 = vld [vmem:[#allocation9 + $0x34] sm:$0xf]
    %v275 = vld [vmem:[#allocation9 + $0x38] sm:$0xf]
    %v276 = vld [vmem:[#allocation9 + $0x3c] sm:$0xf]
    %v277 = vld [vmem:[#allocation9 + $0x40] sm:$0xf]
    %v278 = vld [vmem:[#allocation9 + $0x44] sm:$0xf]
    %v279 = vld [vmem:[#allocation9 + $0x48] sm:$0xf]
    %v280 = vld [vmem:[#allocation9 + $0x4c] sm:$0xf]
    %v281 = vld [vmem:[#allocation9 + $0x50] sm:$0xf]
    %v282 = vld [vmem:[#allocation9 + $0x54] sm:$0xf]
    %v283 = vld [vmem:[#allocation9 + $0x58] sm:$0xf]
    %v284 = vld [vmem:[#allocation9 + $0x5c] sm:$0xf]
    %v285 = vld [vmem:[#allocation9 + $0x60] sm:$0xf]
    %v286 = vld [vmem:[#allocation9 + $0x64] sm:$0xf]
    %v287 = vld [vmem:[#allocation9 + $0x68] sm:$0xf]
    %v288 = vld [vmem:[#allocation9 + $0x6c] sm:$0xf]
    %v289 = vld [vmem:[#allocation9 + $0x70] sm:$0xf]
    %v290 = vld [vmem:[#allocation9 + $0x74] sm:$0xf]
    %v291 = vld [vmem:[#allocation9 + $0x78] sm:$0xf]
    %v292 = vld [vmem:[#allocation9 + $0x7c] sm:$0xf]
    %v293 = vld [vmem:[%s4] sm:$0x1]
    %v295 = vperm.slane %v293, 0
    %v329 = vunpack.c.l.b16 %v261
    %v330 = vunpack.c.l.b16 %v262
    %v331 = vunpack.c.l.b16 %v263
    %v332 = vunpack.c.l.b16 %v264
    %v333 = vunpack.c.l.b16 %v265
    %v334 = vunpack.c.l.b16 %v266
    %v335 = vunpack.c.l.b16 %v267
    %v336 = vunpack.c.l.b16 %v268
    %v337 = vunpack.c.l.b16 %v269
    %v338 = vunpack.c.l.b16 %v270
    %v339 = vunpack.c.l.b16 %v271
    %v340 = vunpack.c.l.b16 %v272
    %v341 = vunpack.c.l.b16 %v273
    %v342 = vunpack.c.l.b16 %v274
    %v343 = vunpack.c.l.b16 %v275
    %v344 = vunpack.c.l.b16 %v276
    %v345 = vunpack.c.l.b16 %v277
    %v346 = vunpack.c.l.b16 %v278
    %v347 = vunpack.c.l.b16 %v279
    %v348 = vunpack.c.l.b16 %v280
    %v349 = vunpack.c.l.b16 %v281
    %v350 = vunpack.c.l.b16 %v282
    %v351 = vunpack.c.l.b16 %v283
    %v352 = vunpack.c.l.b16 %v284
    %v353 = vunpack.c.l.b16 %v285
    %v354 = vunpack.c.l.b16 %v286
    %v355 = vunpack.c.l.b16 %v287
    %v356 = vunpack.c.l.b16 %v288
    %v357 = vunpack.c.l.b16 %v289
    %v358 = vunpack.c.l.b16 %v290
    %v359 = vunpack.c.l.b16 %v291
    %v360 = vunpack.c.l.b16 %v292
    %v361 = vpack.c.b16 %v330, %v329
    %v362 = vpack.c.b16 %v332, %v331
    %v363 = vpack.c.b16 %v334, %v333
    %v364 = vpack.c.b16 %v336, %v335
    %v365 = vpack.c.b16 %v338, %v337
    %v366 = vpack.c.b16 %v340, %v339
    %v367 = vpack.c.b16 %v342, %v341
    %v368 = vpack.c.b16 %v344, %v343
    %v369 = vpack.c.b16 %v346, %v345
    %v370 = vpack.c.b16 %v348, %v347
    %v371 = vpack.c.b16 %v350, %v349
    %v372 = vpack.c.b16 %v352, %v351
    %v373 = vpack.c.b16 %v354, %v353
    %v374 = vpack.c.b16 %v356, %v355
    %v375 = vpack.c.b16 %v358, %v357
    %v376 = vpack.c.b16 %v360, %v359
    %393 = vmatpush.bf16.msra.mxu0 %v368
    %394 = vmatpush.bf16.msra.mxu0 %v367
    %395 = vmatpush.bf16.msra.mxu0 %v366
    %396 = vmatpush.bf16.msra.mxu0 %v365
    %397 = vmatpush.bf16.msra.mxu0 %v364
    %398 = vmatpush.bf16.msra.mxu0 %v363
    %399 = vmatpush.bf16.msra.mxu0 %v362
    %400 = vmatpush.bf16.msra.mxu0 %v361
    %401 = vmatmul.bf16.gmra.mxu0 %v259
    %v402 = vpop.f32.mrf.mxu0
    %v403 = vadd.f32 %v295, %v402
    %v404 = vpop.f32.mrf.mxu0
    %405 = vdwg.mxu0
    %406 = vmatpush.bf16.msra.mxu0 %v376
    %407 = vmatpush.bf16.msra.mxu0 %v375
    %408 = vmatpush.bf16.msra.mxu0 %v374
    %409 = vmatpush.bf16.msra.mxu0 %v373
    %410 = vmatpush.bf16.msra.mxu0 %v372
    %411 = vmatpush.bf16.msra.mxu0 %v371
    %412 = vmatpush.bf16.msra.mxu0 %v370
    %413 = vmatpush.bf16.msra.mxu0 %v369
    %414 = vmatmul.bf16.gmra.mxu0 %v260
    %v415 = vpop.f32.mrf.mxu0
    %v416 = vadd.f32 %v403, %v415
    %v417 = vpop.f32.mrf.mxu0
    %418 = vdwg.mxu0
    %v419 = vmax.f32 %v416, 0.0
    %v420 = vpack.c.bf16 %v419, %v419
    %v421 = vld [vmem:[#allocation11] sm:$0xf]
    %v422 = vld [vmem:[#allocation11 + $0x4] sm:$0xf]
    %v423 = vld [vmem:[#allocation11 + $0x8] sm:$0xf]
    %v424 = vld [vmem:[#allocation11 + $0xc] sm:$0xf]
    %v425 = vld [vmem:[#allocation11 + $0x10] sm:$0xf]
    %v426 = vld [vmem:[#allocation11 + $0x14] sm:$0xf]
    %v427 = vld [vmem:[#allocation11 + $0x18] sm:$0xf]
    %v428 = vld [vmem:[#allocation11 + $0x1c] sm:$0xf]
    %v429 = vld [vmem:[#allocation11 + $0x20] sm:$0xf]
    %v430 = vld [vmem:[#allocation11 + $0x24] sm:$0xf]
    %v431 = vld [vmem:[#allocation11 + $0x28] sm:$0xf]
    %v432 = vld [vmem:[#allocation11 + $0x2c] sm:$0xf]
    %v433 = vld [vmem:[#allocation11 + $0x30] sm:$0xf]
    %v434 = vld [vmem:[#allocation11 + $0x34] sm:$0xf]
    %v435 = vld [vmem:[#allocation11 + $0x38] sm:$0xf]
    %v436 = vld [vmem:[#allocation11 + $0x3c] sm:$0xf]
    %v437 = vld [vmem:[%s6] sm:$0x1]
    %v439 = vperm.slane %v437, 0
    %v457 = vunpack.c.l.b16 %v421
    %v458 = vunpack.c.l.b16 %v422
    %v459 = vunpack.c.l.b16 %v423
    %v460 = vunpack.c.l.b16 %v424
    %v461 = vunpack.c.l.b16 %v425
    %v462 = vunpack.c.l.b16 %v426
    %v463 = vunpack.c.l.b16 %v427
    %v464 = vunpack.c.l.b16 %v428
    %v465 = vunpack.c.l.b16 %v429
    %v466 = vunpack.c.l.b16 %v430
    %v467 = vunpack.c.l.b16 %v431
    %v468 = vunpack.c.l.b16 %v432
    %v469 = vunpack.c.l.b16 %v433
    %v470 = vunpack.c.l.b16 %v434
    %v471 = vunpack.c.l.b16 %v435
    %v472 = vunpack.c.l.b16 %v436
    %v473 = vpack.c.b16 %v458, %v457
    %v474 = vpack.c.b16 %v460, %v459
    %v475 = vpack.c.b16 %v462, %v461
    %v476 = vpack.c.b16 %v464, %v463
    %v477 = vpack.c.b16 %v466, %v465
    %v478 = vpack.c.b16 %v468, %v467
    %v479 = vpack.c.b16 %v470, %v469
    %v480 = vpack.c.b16 %v472, %v471
    %489 = vmatpush.bf16.msra.mxu0 %v480
    %490 = vmatpush.bf16.msra.mxu0 %v479
    %491 = vmatpush.bf16.msra.mxu0 %v478
    %492 = vmatpush.bf16.msra.mxu0 %v477
    %493 = vmatpush.bf16.msra.mxu0 %v476
    %494 = vmatpush.bf16.msra.mxu0 %v475
    %495 = vmatpush.bf16.msra.mxu0 %v474
    %496 = vmatpush.bf16.msra.mxu0 %v473
    %497 = vmatmul.bf16.gmra.mxu0 %v420
    %v498 = vpop.f32.mrf.mxu0
    %v499 = vadd.f32 %v439, %v498
    %v500 = vpop.f32.mrf.mxu0
    %501 = vdwg.mxu0
    %v502 = vmax.f32 %v499, 0.0
    %v503 = vpack.c.bf16 %v502, %v502
    %v504 = vld [vmem:[#allocation12] sm:$0xf]
    %v505 = vld [vmem:[#allocation12 + $0x4] sm:$0xf]
    %v506 = vld [vmem:[#allocation12 + $0x8] sm:$0xf]
    %v507 = vld [vmem:[#allocation12 + $0xc] sm:$0xf]
    %v508 = vld [vmem:[#allocation12 + $0x10] sm:$0xf]
    %v509 = vld [vmem:[#allocation12 + $0x14] sm:$0xf]
    %v510 = vld [vmem:[#allocation12 + $0x18] sm:$0xf]
    %v511 = vld [vmem:[#allocation12 + $0x1c] sm:$0xf]
    %v512 = vld [vmem:[#allocation12 + $0x20] sm:$0xf]
    %v513 = vld [vmem:[#allocation12 + $0x24] sm:$0xf]
    %v514 = vld [vmem:[#allocation12 + $0x28] sm:$0xf]
    %v515 = vld [vmem:[#allocation12 + $0x2c] sm:$0xf]
    %v516 = vld [vmem:[#allocation12 + $0x30] sm:$0xf]
    %v517 = vld [vmem:[#allocation12 + $0x34] sm:$0xf]
    %v518 = vld [vmem:[#allocation12 + $0x38] sm:$0xf]
    %v519 = vld [vmem:[#allocation12 + $0x3c] sm:$0xf]
    %v520 = vld [vmem:[%s8] sm:$0x1]
    %v522 = vperm.slane %v520, 0
    %v540 = vunpack.c.l.b16 %v504
    %v541 = vunpack.c.l.b16 %v505
    %v542 = vunpack.c.l.b16 %v506
    %v543 = vunpack.c.l.b16 %v507
    %v544 = vunpack.c.l.b16 %v508
    %v545 = vunpack.c.l.b16 %v509
    %v546 = vunpack.c.l.b16 %v510
    %v547 = vunpack.c.l.b16 %v511
    %v548 = vunpack.c.l.b16 %v512
    %v549 = vunpack.c.l.b16 %v513
    %v550 = vunpack.c.l.b16 %v514
    %v551 = vunpack.c.l.b16 %v515
    %v552 = vunpack.c.l.b16 %v516
    %v553 = vunpack.c.l.b16 %v517
    %v554 = vunpack.c.l.b16 %v518
    %v555 = vunpack.c.l.b16 %v519
    %v556 = vpack.c.b16 %v541, %v540
    %v557 = vpack.c.b16 %v543, %v542
    %v558 = vpack.c.b16 %v545, %v544
    %v559 = vpack.c.b16 %v547, %v546
    %v560 = vpack.c.b16 %v549, %v548
    %v561 = vpack.c.b16 %v551, %v550
    %v562 = vpack.c.b16 %v553, %v552
    %v563 = vpack.c.b16 %v555, %v554
    %572 = vmatpush.bf16.msra.mxu0 %v563
    %573 = vmatpush.bf16.msra.mxu0 %v562
    %574 = vmatpush.bf16.msra.mxu0 %v561
    %575 = vmatpush.bf16.msra.mxu0 %v560
    %576 = vmatpush.bf16.msra.mxu0 %v559
    %577 = vmatpush.bf16.msra.mxu0 %v558
    %578 = vmatpush.bf16.msra.mxu0 %v557
    %579 = vmatpush.bf16.msra.mxu0 %v556
    %580 = vmatmul.bf16.gmra.mxu0 %v503
    %v581 = vpop.f32.mrf.mxu0
    %v582 = vadd.f32 %v522, %v581
    %v583 = vpop.f32.mrf.mxu0
    %584 = vdwg.mxu0
    %vm585 = vcmask 115712
    %586 = vst.msk [vmem:[#allocation14] sm:$0x3] %vm585, %v582
    // Predicated region
    $region62: #{mlpnet_forward.1} parent=1 // pred_check
      _
    $region63: #{mlpnet_forward.1} parent=1 // pred_check_branch
      %588 = sbr.rel (0) target = $region65
    $region64: #{mlpnet_forward.1} parent=1 // pred_region
      %590 = vsyncadd [#allocation5], 0
      %s592 = sshll.u32 [#allocation14], 4
      %s593 = int_to_ptr.vmem [resolvable:$true] %s592
      %s594 = sshll.u32 %s9, 4
      %s595 = int_to_ptr.hbm [resolvable:$true] %s594
      %597 = dma.vmem_to_hbm [thread:$0]  %s593, 32, %s595, [#allocation5]
    $region65: #{mlpnet_forward.1} parent=1 // pred_fallthru
      _
    // Predicated region
    $region66: #{mlpnet_forward.1} parent=1 // pred_check
      _
    $region67: #{mlpnet_forward.1} parent=1 // pred_check_branch
      %599 = sbr.rel (0) target = $region69
    $region68: #{mlpnet_forward.1} parent=1 // pred_region
      %601 = dma.done [#allocation5], 32
    $region69: #{mlpnet_forward.1} parent=1 // pred_fallthru
      _
    %602 = vsyncpa [#allocation4], 1
    %603 = vsyncpa [#allocation7], 1
    %604 = vsyncpa [#allocation10], 1
    %605 = vsyncpa [#allocation13], 1
    %606 = vsyncpa [#allocation5], 1

</llo_original>
